<compile_context>
chip_gen: v7x
topology: tpu7x:2x2x1
jax: 0.10.0
libtpu: 0.0.40
codegen_flags: <defaults>
</compile_context>

<pallas_src>
import numpy as np
import jax
import jax.numpy as jnp
from jax.experimental import pallas as pl
from jax.experimental.pallas import tpu as pltpu


# ----------------------------- small host-side helpers ------------------------------------


def _nearest_src(out_size, in_size):
    """PyTorch F.interpolate(mode='nearest') source index: floor(dst * in / out)."""
    return (np.arange(out_size) * in_size) // out_size


def _sel_matrix(in_size, out_size):
    """(in, out) 0/1 selector; sel[i, o] = 1 iff the nearest source of output o is input i."""
    sel = np.zeros((in_size, out_size), np.float32)
    sel[_nearest_src(out_size, in_size), np.arange(out_size)] = 1.0
    return sel


def _pad_cols(mat, cols_to):
    """Zero-pad the column (lane) axis up to `cols_to` (keeps stores lane-dense)."""
    pad = cols_to - mat.shape[1]
    if pad > 0:
        mat = np.concatenate([mat, np.zeros((mat.shape[0], pad), mat.dtype)], axis=1)
    return mat


def _round_up(v, m):
    return ((v + m - 1) // m) * m


def _vmem_limits():
    """Generation-aware (limit, row-block budget) in bytes."""
    try:
        cap = int(pltpu.get_tpu_info().vmem_capacity_bytes)
    except Exception:                       # not on TPU / attribute unavailable
        cap = 64 << 20
    limit = max(32 << 20, min(3 * cap // 4, 96 << 20))      # 48 MiB on v7x, 96 MiB on v5e/v6e
    budget = max(4 << 20, min(24 << 20, limit // 3))         # working set for the row blocks
    return limit, budget


def _pick_row_block(n_rows, row_bytes, fixed_bytes, budget_bytes, itemsize, cap=2048):
    """Rows per grid block.

    * budgets double-buffered per-row traffic plus the fixed single-buffered R bytes,
    * dtype-aware sublane rounding (8 rows for 4B, 16 for 2B, 32 for 1B dtypes),
    * prefers multiples of 256 (MXU M dim) when large,
    * guarantees >= 2 grid steps whenever the rows can be split (v7x megacore).
    """
    sub = max(8, 32 // max(1, itemsize))
    avail = max(0, budget_bytes - fixed_bytes)
    fit = max(sub, avail // max(1, row_bytes))
    mt = min(cap, fit)
    if mt >= n_rows:
        if n_rows > sub:                    # split so ("parallel",) can use both v7x cores
            return _round_up(pl.cdiv(n_rows, 2), sub)
        return n_rows                       # tiny: single full-extent block is legal
    if mt >= 512:
        return (mt // 256) * 256
    return max(sub, (mt // sub) * sub)


def _const_operand_spec(shape):
    """BlockSpec for a grid-invariant operand: constant index_map, single-buffered."""
    idx = lambda *args: (0,) * len(shape)
    try:
        return pl.BlockSpec(shape, idx, pipeline_mode=pl.Buffered(1))
    except Exception:                       # older JAX without pipeline_mode kwarg
        return pl.BlockSpec(shape, idx)


# ----------------------------------- kernels ----------------------------------------------


def _make_replicate_store_kernel(kx, yzo_pad):
    """Default path body: t = x @ R once, stored kx times into 128-aligned lane slices."""
    def kernel(x_ref, r_ref, o_ref):
        # x_ref: (Mt, Y*Z)   r_ref: (Y*Z, yzo_pad)   o_ref: (Mt, kx*yzo_pad)
        t = jnp.dot(x_ref[...], r_ref[...],
                    preferred_element_type=jnp.float32).astype(o_ref.dtype)
        for j in range(kx):                 # kx is small & static; every store is lane-dense
            o_ref[:, j * yzo_pad:(j + 1) * yzo_pad] = t
    return kernel


def _general_kernel(src_ref, x_ref, r_ref, o_ref):
    """General-stride body: one fused Y/Z selection matmul per (row block, output xo)."""
    # src_ref is the scalar-prefetch table (only used inside the index_maps).
    del src_ref
    # x_ref: (1, Nt, Y*Z)   r_ref: (Y*Z, yzo_pad)   o_ref: (Nt, yzo_pad)
    o_ref[...] = jnp.dot(x_ref[0], r_ref[...],
                         preferred_element_type=jnp.float32).astype(o_ref.dtype)


# ----------------------------------- wrapper ----------------------------------------------


def spatial_pooling_avg_unpool(x, indices_spa=None, indices_sph=None,
                               kernel_size_spa=(2, 2, 2), stride=None):
    """Pallas implementation of SpatialPoolingAvgUnpool.forward (nearest upsample)."""
    del indices_spa, indices_sph            # unused by the reference forward as well
    if stride is None:
        stride = kernel_size_spa

    redim = (x.ndim == 6)
    if redim:
        B, Fin, V, X, Y, Z = x.shape
        xf = x.reshape(B, Fin * V, X, Y, Z)
    else:
        B, Fin, X, Y, Z = x.shape
        xf = x

    # TODO(synk): integer inputs would round-trip through the f32 MXU accumulate (exact only
    # for |x| < 2^24, and v7x has no integer MXU path); the module operates on float feature
    # maps, so float dtypes are assumed here.

    Xo = (X - 1) * stride[0] + kernel_size_spa[0]
    Yo = (Y - 1) * stride[1] + kernel_size_spa[1]
    Zo = (Z - 1) * stride[2] + kernel_size_spa[2]

    N = xf.shape[0] * xf.shape[1]
    YZ, YZo = Y * Z, Yo * Zo
    itemsize = jnp.dtype(x.dtype).itemsize
    vmem_limit, budget = _vmem_limits()

    # Fused Y (x) Z nearest-neighbour 0/1 selector (exact in bf16/f32; f32 MXU accumulation).
    # TODO(synk): for very large Y*Z the dense kron selector is O((Y*Z)*(Yo*Zo)) in VMEM and
    # FLOPs; a factored path (small Z-selector matmul + Y-row replication) would be needed.
    r_yz = np.kron(_sel_matrix(Y, Yo), _sel_matrix(Z, Zo))          # (Y*Z, Yo*Zo)

    if stride[0] == kernel_size_spa[0]:
        # Default path: Xo == X*kx, every input x-slab feeds exactly kx consecutive output
        # x-rows -> one lane-dense matmul per row block, result stored kx times.
        kx = kernel_size_spa[0]
        yzo_pad = YZo if (kx == 1 or YZo % 128 == 0) else _round_up(YZo, 128)
        cols = kx * yzo_pad
        M = N * X
        x2 = xf.reshape(M, YZ)
        r = jnp.asarray(_pad_cols(r_yz, yzo_pad), dtype=x.dtype)    # (Y*Z, yzo_pad)

        fixed = YZ * yzo_pad * itemsize                             # resident R buffer
        row_bytes = 2 * (YZ + cols) * itemsize + yzo_pad * 4        # dbl-buffered io + f32 t
        Mt = _pick_row_block(M, row_bytes, fixed, budget, itemsize)

        out2 = pl.pallas_call(
            _make_replicate_store_kernel(kx, yzo_pad),
            out_shape=jax.ShapeDtypeStruct((M, cols), x.dtype),
            grid_spec=pltpu.PrefetchScalarGridSpec(
                num_scalar_prefetch=0,
                grid=(pl.cdiv(M, Mt),),
                in_specs=[pl.BlockSpec((Mt, YZ), lambda i: (i, 0)),
                          _const_operand_spec((YZ, yzo_pad))],
                out_specs=pl.BlockSpec((Mt, cols), lambda i: (i, 0)),
            ),
            compiler_params=pltpu.CompilerParams(
                dimension_semantics=("parallel",),
                vmem_limit_bytes=vmem_limit),
            cost_estimate=pl.CostEstimate(
                flops=2 * M * YZ * yzo_pad,
                transcendentals=0,
                bytes_accessed=(M * YZ + M * cols + YZ * yzo_pad) * itemsize),
        )(x2, r)
        # NOTE: a partial final row block computes on padded rows; Pallas discards the
        # out-of-bounds output writes, and nothing accumulates across grid steps.
        out = out2.reshape(N, X, kx, yzo_pad)[..., :YZo].reshape(N, Xo, Yo, Zo)
    else:
        # General stride != kernel along x: 2-D grid (row block, output xo). The source
        # x-slab is selected by a scalar-prefetched src_x table in the input index_map, so
        # live ranges stay bounded, pipelining is restored, and the input DMA is skipped
        # across consecutive xo that share a source slab.
        yzo_pad = _round_up(YZo, 128)
        src_x = jnp.asarray(_nearest_src(Xo, X), dtype=jnp.int32)   # (Xo,)
        xT = jnp.transpose(xf.reshape(N, X, YZ), (1, 0, 2))         # (X, N, Y*Z); small input
        r = jnp.asarray(_pad_cols(r_yz, yzo_pad), dtype=x.dtype)

        fixed = YZ * yzo_pad * itemsize
        row_bytes = 2 * (YZ + yzo_pad) * itemsize + yzo_pad * 4
        Nt = _pick_row_block(N, row_bytes, fixed, budget, itemsize)

        out2 = pl.pallas_call(
            _general_kernel,
            out_shape=jax.ShapeDtypeStruct((N, Xo * yzo_pad), x.dtype),
            grid_spec=pltpu.PrefetchScalarGridSpec(
                num_scalar_prefetch=1,
                grid=(pl.cdiv(N, Nt), Xo),
                in_specs=[pl.BlockSpec((1, Nt, YZ),
                                       lambda n, xo, src: (src[xo], n, 0)),
                          _const_operand_spec((YZ, yzo_pad))],
                out_specs=pl.BlockSpec((Nt, yzo_pad), lambda n, xo, src: (n, xo)),
            ),
            compiler_params=pltpu.CompilerParams(
                dimension_semantics=("parallel", "parallel"),
                vmem_limit_bytes=vmem_limit),
            cost_estimate=pl.CostEstimate(
                flops=2 * N * Xo * YZ * yzo_pad,
                transcendentals=0,
                bytes_accessed=(N * X * YZ + N * Xo * yzo_pad + YZ * yzo_pad) * itemsize),
        )(src_x, xT, r)
        out = out2.reshape(N, Xo, yzo_pad)[..., :YZo].reshape(N, Xo, Yo, Zo)

    out = out.reshape(xf.shape[0], xf.shape[1], Xo, Yo, Zo)
    if redim:
        out = out.reshape(B, Fin, V, Xo, Yo, Zo)
    return out


# ---------------------------------- reference & tests -------------------------------------


def _reference_nearest(x, kernel_size_spa=(2, 2, 2), stride=None):
    """Pure-JAX reference matching F.interpolate(mode='nearest')."""
    if stride is None:
        stride = kernel_size_spa
    X, Y, Z = x.shape[-3:]
    Xo = (X - 1) * stride[0] + kernel_size_spa[0]
    Yo = (Y - 1) * stride[1] + kernel_size_spa[1]
    Zo = (Z - 1) * stride[2] + kernel_size_spa[2]
    ix = (np.arange(Xo) * X) // Xo
    iy = (np.arange(Yo) * Y) // Yo
    iz = (np.arange(Zo) * Z) // Zo
    return x.take(ix, axis=-3).take(iy, axis=-2).take(iz, axis=-1)


if __name__ == "__main__":
    key = jax.random.PRNGKey(0)

    # 6-D input [B, Fin, V, X, Y, Z] (module's documented shape), default k = s = (2,2,2)
    x = jax.random.normal(key, (2, 3, 4, 4, 4, 8), dtype=jnp.float32)
    out = jax.block_until_ready(spatial_pooling_avg_unpool(x, None, None))
    assert out.shape == (2, 3, 4, 8, 8, 16), out.shape
    np.testing.assert_allclose(np.asarray(out), np.asarray(_reference_nearest(x)),
                               rtol=1e-6, atol=1e-6)

    # 5-D path [B, Fin, X, Y, Z]
    x5 = jax.random.normal(jax.random.PRNGKey(1), (2, 4, 4, 4, 8), dtype=jnp.float32)
    out5 = jax.block_until_ready(spatial_pooling_avg_unpool(x5))
    np.testing.assert_allclose(np.asarray(out5), np.asarray(_reference_nearest(x5)),
                               rtol=1e-6, atol=1e-6)

    # General-stride path (stride != kernel_size) exercises the scalar-prefetch grid.
    k, s = (2, 2, 2), (1, 1, 1)
    outg = jax.block_until_ready(
        spatial_pooling_avg_unpool(x5, kernel_size_spa=k, stride=s))
    np.testing.assert_allclose(np.asarray(outg),
                               np.asarray(_reference_nearest(x5, k, s)),
                               rtol=1e-6, atol=1e-6)

    print("KERNEL_OK")
</pallas_src>

<mosaic_0001>
module attributes {stable_mosaic.version = 11 : i64} {
  func.func @kernel(%arg0: i32, %arg1: memref<48x32xf32, #tpu.memory_space<vmem>>, %arg2: memref<32x128xf32, #tpu.memory_space<vmem>>, %arg3: memref<48x256xf32, #tpu.memory_space<vmem>>) attributes {dimension_semantics = [#tpu.dimension_semantics<parallel>], iteration_bounds = array<i64: 2>, scalar_prefetch = 0 : i64, scratch_operands = 0 : i64, tpu.core_type = #tpu.core_type<tc>, window_params = [{transform_indices = @transform_0, window_bounds = array<i64: 48, 32>}, {pipeline_mode = #tpu.pipeline_mode<synchronous>, transform_indices = @transform_1, window_bounds = array<i64: 32, 128>}, {transform_indices = @transform_2, window_bounds = array<i64: 48, 256>}]} {
    %c0 = arith.constant 0 : index
    %c0_0 = arith.constant 0 : index
    %0 = vector.load %arg1[%c0, %c0_0] : memref<48x32xf32, #tpu.memory_space<vmem>>, vector<48x32xf32>
    %c0_1 = arith.constant 0 : index
    %c0_2 = arith.constant 0 : index
    %1 = vector.load %arg2[%c0_1, %c0_2] : memref<32x128xf32, #tpu.memory_space<vmem>>, vector<32x128xf32>
    %cst = arith.constant dense<0.000000e+00> : vector<48x128xf32>
    %2 = tpu.matmul %0, %1, %cst {dimension_numbers = #tpu.dot_dimension_numbers<[1], [0], [0], [1], [0, 0, 1, 1], [], []>} : vector<48x32xf32>, vector<32x128xf32>, vector<48x128xf32> -> vector<48x128xf32>
    %c0_3 = arith.constant 0 : index
    %c0_4 = arith.constant 0 : index
    %3 = vector.load %arg3[%c0_3, %c0_4] : memref<48x256xf32, #tpu.memory_space<vmem>>, vector<48x128xf32>
    tpu.vector_store %arg3[%c0_3, %c0_4], %2 {strides = array<i32>} : memref<48x256xf32, #tpu.memory_space<vmem>>, vector<48x128xf32>,
    %c0_5 = arith.constant 0 : index
    %c128 = arith.constant 128 : index
    %4 = vector.load %arg3[%c0_5, %c128] : memref<48x256xf32, #tpu.memory_space<vmem>>, vector<48x128xf32>
    tpu.vector_store %arg3[%c0_5, %c128], %2 {strides = array<i32>} : memref<48x256xf32, #tpu.memory_space<vmem>>, vector<48x128xf32>,
    return
  }
  func.func @transform_0(%arg0: i32) -> (i32, i32) {
    %c0_i32 = arith.constant 0 : i32
    %c0_i32_0 = arith.constant 0 : i32
    return %arg0, %c0_i32 : i32, i32
  }
  func.func @transform_1(%arg0: i32) -> (i32, i32) {
    %c0_i32 = arith.constant 0 : i32
    %c0_i32_0 = arith.constant 0 : i32
    %c0_i32_1 = arith.constant 0 : i32
    return %c0_i32, %c0_i32_0 : i32, i32
  }
  func.func @transform_2(%arg0: i32) -> (i32, i32) {
    %c0_i32 = arith.constant 0 : i32
    %c0_i32_0 = arith.constant 0 : i32
    return %arg0, %c0_i32 : i32, i32
  }
}

</mosaic_0001>

<llo_original>
// kernel: tpu_custom_call.1
$region0: #{tpu_custom_call.1}
  #allocation0 [shape = 'u32[]', space=smem, size = 0x4, offset = 0x4, fixed_abs, tag = 'smem constant byte address 0x4 - core index']
  #allocation1 [shape = 'u32[144,128]{1,0:T(1,128)}', space=vmem, size = 0x12000, scoped, tag = 'internal scratch']
  %s0 = inlined_call_operand.vmem [shape: f32[96,32], index: 0, kind: input, shape index: {}]
  %s1 = inlined_call_operand.vmem [shape: f32[32,128], index: 1, kind: input, shape index: {}]
  %s2 = inlined_call_operand.hbm [shape: f32[96,256], index: 2, kind: output, shape index: {}]
  %s3 = sld [smem:[#allocation0]]
  $region41: #{tpu_custom_call.1} parent=0
    _
  %s5 = ssub.s32 1, %s3
  %s6 = scalar_select 0, %s5, %s3
  $region1: #{tpu_custom_call.1} parent=0
    #allocation2 [shape = 'u8[98304]{0}', space=vmem, size = 0x18000, scoped, tag = 'output window, operand 0']
    #allocation3 [shape = 's32[2]{0}', space=sflag, size = 0x8, scoped, tag = 'scoped memory for tpu_custom_call.1']
    %7 = vsyncpa [#allocation3], 0
    %s8 = scalar_lea.sflag [#allocation3], 1
    %9 = vsyncpa %s8, 0
    loop: start=0, step=1, limit=4
    $region2: #{tpu_custom_call.1} parent=1 // loop_pre_header
      _
    $region3: #{tpu_custom_call.1} parent=1 // loop_header
      %s11 = sphi 0, %s15
      %p12 = scmp.ge.s32.totalorder %s11, 4
      %s21 = sphi 0, %s23
      %s24 = sphi 0, %s21
      %s25 = sphi 0, %s24
      %s41 = sphi 0, %s25
      %s45 = sphi 0, %s45
      %s47 = sphi 0, %s45
      %s48 = sphi 0, %s47
      %s62 = sphi 0, %s48
      %s68 = sphi 0, %s70
      %s71 = sphi 0, %s68
      %s72 = sphi 0, %s71
      %s88 = sphi 0, %s72
    $region4: #{tpu_custom_call.1} parent=1 // loop_header_branch
      %14 = sbr.rel (%p12) target = $region8
    $region5: #{tpu_custom_call.1} parent=1 // loop_body
      %s16 = ssub.s32 %s11, 1
      %s17 = ssub.s32 %s11, 2
      %s18 = sadd.s32 %s11, 1
      %s19 = ssub.s32 %s11, %s18
      %p20 = scmp.eq.s32.totalorder %s19, 0
      %s22 = sadd.s32 %s21, 1
      %s23 = scalar_select %p20, %s21, %s22
      %p26 = pneg %p20
      %p27 = scmp.eq.s32.totalorder %s11, 1
      %p28 = por %p26, %p27
      %p29 = scmp.ne.s32.totalorder %s21, %s24
      %p30 = scmp.eq.s32.totalorder %s11, 0
      %p31 = por %p29, %p30
      %p32 = scmp.ne.s32.totalorder %s21, %s24
      %p33 = scmp.eq.s32.totalorder %s16, 1
      %p34 = por %p32, %p33
      %p35 = scmp.ne.s32.totalorder %s24, %s25
      %p36 = scmp.eq.s32.totalorder %s16, 0
      %p37 = por %p35, %p36
      %p38 = scmp.ne.s32.totalorder %s24, %s25
      %p39 = scmp.eq.s32.totalorder %s17, 1
      %p40 = por %p38, %p39
      %p42 = scmp.ne.s32.totalorder %s25, %s41
      %p43 = scmp.eq.s32.totalorder %s17, 0
      %p44 = por %p42, %p43
      %s46 = sadd.s32 %s45, 1
      %p49 = scmp.eq.s32.totalorder %s11, 1
      %p50 = scmp.ne.s32.totalorder %s45, %s47
      %p51 = scmp.eq.s32.totalorder %s11, 0
      %p52 = por %p50, %p51
      %p53 = scmp.ne.s32.totalorder %s45, %s47
      %p54 = scmp.eq.s32.totalorder %s16, 1
      %p55 = por %p53, %p54
      %p56 = scmp.ne.s32.totalorder %s47, %s48
      %p57 = scmp.eq.s32.totalorder %s16, 0
      %p58 = por %p56, %p57
      %p59 = scmp.ne.s32.totalorder %s47, %s48
      %p60 = scmp.eq.s32.totalorder %s17, 1
      %p61 = por %p59, %p60
      %p63 = scmp.ne.s32.totalorder %s48, %s62
      %p64 = scmp.eq.s32.totalorder %s17, 0
      %p65 = por %p63, %p64
      %s66 = ssub.s32 %s11, %s18
      %p67 = scmp.eq.s32.totalorder %s66, 0
      %s69 = sadd.s32 %s68, 1
      %s70 = scalar_select %p67, %s68, %s69
      %p73 = pneg %p67
      %p74 = scmp.eq.s32.totalorder %s11, 1
      %p75 = por %p73, %p74
      %p76 = scmp.ne.s32.totalorder %s68, %s71
      %p77 = scmp.eq.s32.totalorder %s11, 0
      %p78 = por %p76, %p77
      %p79 = scmp.ne.s32.totalorder %s68, %s71
      %p80 = scmp.eq.s32.totalorder %s16, 1
      %p81 = por %p79, %p80
      %p82 = scmp.ne.s32.totalorder %s71, %s72
      %p83 = scmp.eq.s32.totalorder %s16, 0
      %p84 = por %p82, %p83
      %p85 = scmp.ne.s32.totalorder %s71, %s72
      %p86 = scmp.eq.s32.totalorder %s17, 1
      %p87 = por %p85, %p86
      %p89 = scmp.ne.s32.totalorder %s72, %s88
      %p90 = scmp.eq.s32.totalorder %s17, 0
      %p91 = por %p89, %p90
      %p92 = scmp.le.s32.totalorder 1, %s11
      %p93 = scmp.lt.s32.totalorder %s11, 3
      %p94 = pnand %p92, %p93
      %p95 = pneg %p94
      // Predicated region
      $region9: #{tpu_custom_call.1} parent=5 // pred_check
        _
      $region10: #{tpu_custom_call.1} parent=5 // pred_check_branch
        %97 = sbr.rel (%p94) target = $region12
      $region11: #{tpu_custom_call.1} parent=5 // pred_region
        %s98 = ssub.s32 %s11, 1
        // Predicated region
        $region13: #{tpu_custom_call.1} parent=11 // pred_check
          %p99 = pneg %p58
        $region14: #{tpu_custom_call.1} parent=11 // pred_check_branch
          %101 = sbr.rel (%p99) target = $region16
        $region15: #{tpu_custom_call.1} parent=11 // pred_region
          _
        $region16: #{tpu_custom_call.1} parent=11 // pred_fallthru
          _
      $region12: #{tpu_custom_call.1} parent=5 // pred_fallthru
        _
      %p102 = scmp.lt.s32.totalorder %s11, 2
      // Predicated region
      $region17: #{tpu_custom_call.1} parent=5 // pred_check
        %p103 = pneg %p102
      $region18: #{tpu_custom_call.1} parent=5 // pred_check_branch
        %105 = sbr.rel (%p103) target = $region20
      $region19: #{tpu_custom_call.1} parent=5 // pred_region
        // Predicated region
        $region21: #{tpu_custom_call.1} parent=19 // pred_check
          %p106 = pneg %p31
        $region22: #{tpu_custom_call.1} parent=19 // pred_check_branch
          %108 = sbr.rel (%p106) target = $region24
        $region23: #{tpu_custom_call.1} parent=19 // pred_region
          %s109 = smul.u32 6, %s11
          %p110 = scmp.lt.s32.totalorder %s109, 11
          %s111 = scalar_select %p110, %s109, 11
          %s112 = smul.addr %s111, 8
          %s113 = scalar_lea.vmem %s0, %s112
          %s114 = smul.u32 6, %s11
        $region24: #{tpu_custom_call.1} parent=19 // pred_fallthru
          _
      $region20: #{tpu_custom_call.1} parent=5 // pred_fallthru
        _
      %p115 = scmp.le.s32.totalorder 1, %s11
      %p116 = scmp.lt.s32.totalorder %s11, 3
      %p117 = pnand %p115, %p116
      %p118 = pneg %p117
      // Predicated region
      $region25: #{tpu_custom_call.1} parent=5 // pred_check
        _
      $region26: #{tpu_custom_call.1} parent=5 // pred_check_branch
        %120 = sbr.rel (%p117) target = $region28
      $region27: #{tpu_custom_call.1} parent=5 // pred_region
        %s121 = ssub.s32 %s11, 1
        %s122 = smul.u32 6, %s16
        %p123 = scmp.lt.s32.totalorder %s122, 11
        %s124 = scalar_select %p123, %s122, 11
        %s125 = smul.addr %s124, 8
        %s126 = scalar_lea.vmem %s0, %s125
        %p127 = pneg %p37
        %p128 = pneg %p34
        %p129 = pneg %p58
        %p130 = pneg %p55
        %p131 = pneg %p84
        %p132 = pneg %p81
        %s133 = sand.u32 %s71, 1
        %s134 = scalar_lea.sflag [#allocation3], %s133
        %s135 = sand.u32 %s71, 1
        %s136 = smul.addr %s135, 96
        %s137 = scalar_lea.vmem [#allocation2], %s136
        %s138 = smul.u32 6, %s16
        %p139 = scmp.lt.s32.totalorder %s138, 11
        %s140 = scalar_select %p139, %s138, 11
        %s141 = smul.addr %s140, 8
        %s142 = scalar_lea.vmem %s0, %s141
        %s143 = smul.u32 6, %s16
        %s144 = smul.u32 6, %s16
        %v145 = vld [vmem:[%s142] sm:$0xff]
        %v146 = vld [vmem:[%s142 + $0x8] sm:$0xff]
        %v147 = vld [vmem:[%s142 + $0x10] sm:$0xff]
        %v148 = vld [vmem:[%s142 + $0x18] sm:$0xff]
        %v149 = vld [vmem:[%s142 + $0x20] sm:$0xff]
        %v150 = vld [vmem:[%s142 + $0x28] sm:$0xff]
        %v151 = vld [vmem:[%s1] sm:$0xff]
        %v152 = vld [vmem:[%s1 + $0x8] sm:$0xff]
        %v153 = vld [vmem:[%s1 + $0x10] sm:$0xff]
        %v154 = vld [vmem:[%s1 + $0x18] sm:$0xff]
        %vm155 = vcmask 261120
        %v157 = vsel %vm155, %v145, 0
        %v160 = vsel %vm155, %v146, 0
        %v163 = vsel %vm155, %v147, 0
        %v166 = vsel %vm155, %v148, 0
        %v169 = vsel %vm155, %v149, 0
        %v172 = vsel %vm155, %v150, 0
        %174 = vmatprep.subr.mxu0 0.0
        %175 = vmatpush1.msra.mxu0 %v151
        %176 = vmatprep.subr.mxu0 0.0
        %177 = vmatpush1.msra.mxu0 %v152
        %178 = vmatprep.subr.mxu0 0.0
        %179 = vmatpush1.msra.mxu0 %v153
        %180 = vmatprep.subr.mxu0 0.0
        %181 = vmatpush1.msra.mxu0 %v154
        %182 = vmatprep.subr.mxu0 0.0
        %183 = vmatpush1.msra.mxu0 0.0
        %184 = vmatprep.subr.mxu0 0.0
        %185 = vmatpush1.msra.mxu0 0.0
        %186 = vmatprep.subr.mxu0 0.0
        %187 = vmatpush1.msra.mxu0 0.0
        %188 = vmatprep.subr.mxu0 0.0
        %189 = vmatpush1.msra.mxu0 0.0
        %190 = vmatprep.subr.mxu0 0.0
        %191 = vmatpush1.msra.mxu0 0.0
        %192 = vmatprep.subr.mxu0 0.0
        %193 = vmatpush1.msra.mxu0 0.0
        %194 = vmatprep.subr.mxu0 0.0
        %195 = vmatpush1.msra.mxu0 0.0
        %196 = vmatprep.subr.mxu0 0.0
        %197 = vmatpush1.msra.mxu0 0.0
        %198 = vmatprep.subr.mxu0 0.0
        %199 = vmatpush1.msra.mxu0 0.0
        %200 = vmatprep.subr.mxu0 0.0
        %201 = vmatpush1.msra.mxu0 0.0
        %202 = vmatprep.subr.mxu0 0.0
        %203 = vmatpush1.msra.mxu0 0.0
        %204 = vmatprep.subr.mxu0 0.0
        %205 = vmatpush1.msra.mxu0 0.0
        %206 = vmatprep.subr.mxu0 0.0
        %207 = vmatpush1.msra.mxu0 0.0
        %208 = vmatprep.subr.mxu0 0.0
        %209 = vmatpush1.msra.mxu0 0.0
        %210 = vmatprep.subr.mxu0 0.0
        %211 = vmatpush1.msra.mxu0 0.0
        %212 = vmatprep.subr.mxu0 0.0
        %213 = vmatpush1.msra.mxu0 0.0
        %214 = vmatprep.subr.mxu0 0.0
        %215 = vmatpush1.msra.mxu0 0.0
        %216 = vmatprep.subr.mxu0 0.0
        %217 = vmatpush1.msra.mxu0 0.0
        %218 = vmatprep.subr.mxu0 0.0
        %219 = vmatpush1.msra.mxu0 0.0
        %220 = vmatprep.subr.mxu0 0.0
        %221 = vmatpush1.msra.mxu0 0.0
        %222 = vmatprep.subr.mxu0 0.0
        %223 = vmatpush1.msra.mxu0 0.0
        %224 = vmatprep.subr.mxu0 0.0
        %225 = vmatpush1.msra.mxu0 0.0
        %226 = vmatprep.subr.mxu0 0.0
        %227 = vmatpush1.msra.mxu0 0.0
        %228 = vmatprep.subr.mxu0 0.0
        %229 = vmatpush1.msra.mxu0 0.0
        %230 = vmatprep.subr.mxu0 0.0
        %231 = vmatpush1.msra.mxu0 0.0
        %232 = vmatprep.subr.mxu0 0.0
        %233 = vmatpush1.msra.mxu0 0.0
        %234 = vmatprep.subr.mxu0 0.0
        %235 = vmatpush1.msra.mxu0 0.0
        %236 = vmatprep.subr.mxu0 0.0
        %237 = vmatpush1.msra.mxu0 0.0
        %238 = vmatprep.mubr.f32.mxu0 0.0
        %239 = vmatmul.mubr.f32.gmra.mrb[0].mxu0 %v157
        %v240 = vpop.f32.mrb[0].mxu0
        %v241 = vadd.f32 0.0, %v240
        %v242 = vpop.f32.mrb[0].mxu0
        %243 = vmatprep.mubr.f32.mxu0 0.0
        %244 = vmatmul.mubr.f32.gmra.mrb[0].mxu0 %v160
        %v245 = vpop.f32.mrb[0].mxu0
        %v246 = vadd.f32 0.0, %v245
        %v247 = vpop.f32.mrb[0].mxu0
        %248 = vmatprep.mubr.f32.mxu0 0.0
        %249 = vmatmul.mubr.f32.gmra.mrb[0].mxu0 %v163
        %v250 = vpop.f32.mrb[0].mxu0
        %v251 = vadd.f32 0.0, %v250
        %v252 = vpop.f32.mrb[0].mxu0
        %253 = vmatprep.mubr.f32.mxu0 0.0
        %254 = vmatmul.mubr.f32.gmra.mrb[0].mxu0 %v166
        %v255 = vpop.f32.mrb[0].mxu0
        %v256 = vadd.f32 0.0, %v255
        %v257 = vpop.f32.mrb[0].mxu0
        %258 = vmatprep.mubr.f32.mxu0 0.0
        %259 = vmatmul.mubr.f32.gmra.mrb[0].mxu0 %v169
        %v260 = vpop.f32.mrb[0].mxu0
        %v261 = vadd.f32 0.0, %v260
        %v262 = vpop.f32.mrb[0].mxu0
        %263 = vmatprep.mubr.f32.mxu0 0.0
        %264 = vmatmul.mubr.f32.gmra.mrb[0].mxu0 %v172
        %v265 = vpop.f32.mrb[0].mxu0
        %v266 = vadd.f32 0.0, %v265
        %v267 = vpop.f32.mrb[0].mxu0
        %268 = vdwg.mxu0
        %269 = vst [vmem:[%s137] sm:$0xff] %v241
        %270 = vst [vmem:[%s137 + $0x10] sm:$0xff] %v246
        %271 = vst [vmem:[%s137 + $0x20] sm:$0xff] %v251
        %272 = vst [vmem:[%s137 + $0x30] sm:$0xff] %v256
        %273 = vst [vmem:[%s137 + $0x40] sm:$0xff] %v261
        %274 = vst [vmem:[%s137 + $0x50] sm:$0xff] %v266
        %275 = vst [vmem:[%s137 + $0x8] sm:$0xff] %v241
        %276 = vst [vmem:[%s137 + $0x18] sm:$0xff] %v246
        %277 = vst [vmem:[%s137 + $0x28] sm:$0xff] %v251
        %278 = vst [vmem:[%s137 + $0x38] sm:$0xff] %v256
        %279 = vst [vmem:[%s137 + $0x48] sm:$0xff] %v261
        %280 = vst [vmem:[%s137 + $0x58] sm:$0xff] %v266
        %s281 = sand.u32 %s71, 1
        %s282 = scalar_lea.sflag [#allocation3], %s281
        %s283 = sand.u32 %s71, 1
        %s284 = smul.addr %s283, 96
        %s285 = scalar_lea.vmem [#allocation2], %s284
        // Predicated region
        $region29: #{tpu_custom_call.1} parent=27 // pred_check
          %p286 = pneg %p81
        $region30: #{tpu_custom_call.1} parent=27 // pred_check_branch
          %288 = sbr.rel (%p286) target = $region32
        $region31: #{tpu_custom_call.1} parent=27 // pred_region
          %s289 = smul.u32 6, %s16
          %s291 = ssub.s32 1536, 1536
          %292 = vsyncadd %s282, %s291
          %s293 = smul.addr %s289, 2
          %s294 = smul.addr %s293, 128
          %s295 = scalar_lea.hbm %s2, %s294
          %s296 = sshll.u32 %s285, 4
          %s297 = int_to_ptr.vmem [resolvable:$true] %s296
          %302 = dma.vmem_to_hbm [thread:$0]  %s297, 1536, %s295, %s282, 256, 256, 16
        $region32: #{tpu_custom_call.1} parent=27 // pred_fallthru
          _
      $region28: #{tpu_custom_call.1} parent=5 // pred_fallthru
        _
      %p303 = scmp.le.s32.totalorder 2, %s11
      // Predicated region
      $region33: #{tpu_custom_call.1} parent=5 // pred_check
        %p304 = pneg %p303
      $region34: #{tpu_custom_call.1} parent=5 // pred_check_branch
        %306 = sbr.rel (%p304) target = $region36
      $region35: #{tpu_custom_call.1} parent=5 // pred_region
        %s307 = ssub.s32 %s11, 2
        // Predicated region
        $region37: #{tpu_custom_call.1} parent=35 // pred_check
          %p308 = pneg %p87
        $region38: #{tpu_custom_call.1} parent=35 // pred_check_branch
          %310 = sbr.rel (%p308) target = $region40
        $region39: #{tpu_custom_call.1} parent=35 // pred_region
          %s311 = sand.u32 %s72, 1
          %s312 = scalar_lea.sflag [#allocation3], %s311
          %s313 = sand.u32 %s72, 1
          %s314 = smul.addr %s313, 96
          %s315 = scalar_lea.vmem [#allocation2], %s314
          %316 = dma.done %s312, 1536
        $region40: #{tpu_custom_call.1} parent=35 // pred_fallthru
          _
      $region36: #{tpu_custom_call.1} parent=5 // pred_fallthru
        _
    $region6: #{tpu_custom_call.1} parent=1 // loop_footer
      %s15 = sadd.s32 1, %s11
    $region7: #{tpu_custom_call.1} parent=1 // loop_footer_branch
      %10 = sbr.rel target = $region3
    $region8: #{tpu_custom_call.1} parent=1 // loop_exit
      _
    %317 = vsyncpa [#allocation3], 1
    %s318 = scalar_lea.sflag [#allocation3], 1
    %319 = vsyncpa %s318, 1

</llo_original>
